<compile_context>
chip_gen: v7x
topology: tpu7x:2x2x1
jax: 0.10.0
libtpu: 0.0.40
codegen_flags: <defaults>
</compile_context>

<pallas_src>
import jax
import jax.numpy as jnp
from jax.experimental import pallas as pl
from jax.experimental.pallas import tpu as pltpu

INPUT_SIZE = 1
HIDDEN_SIZE = 64
OUTPUT_SIZE = 2

_MAX_BATCH_TILE = 2048  # lane-axis tile; tiny VMEM footprint even at 2048


def _mlp_kernel(xT_ref, w1_ref, b1_ref, w2_ref, b2_ref, oT_ref):
    # xT: [1, TB]          (batch on lanes)
    # w1: [H, 1]  b1: [H, 1]   (PyTorch fc1.weight / fc1.bias layout)
    # w2: [O, H]  b2: [O, 1]   (PyTorch fc2.weight / fc2.bias layout)
    # oT: [O, TB]
    #
    # fc1 has K=1 contraction -> pure outer product; do it on the VPU
    # (broadcast multiply-add), keeping the MXU free for the second matmul.
    h = w1_ref[...] * xT_ref[...] + b1_ref[...]          # [H, TB]
    h = jnp.maximum(h, 0.0)                               # ReLU
    # fc2: [O, H] @ [H, TB] -> [O, TB]; N = TB is lane-dense on the MXU.
    y = jnp.dot(w2_ref[...], h, preferred_element_type=jnp.float32)
    oT_ref[...] = (y + b2_ref[...]).astype(oT_ref.dtype)


def _pick_batch_tile(B):
    # Single full block unless B is a multiple of 128 and large enough to tile.
    if B <= _MAX_BATCH_TILE or B % 128 != 0:
        return B
    tb = _MAX_BATCH_TILE
    while B % tb != 0:          # terminates at 128 (B % 128 == 0 here)
        tb -= 128
    return tb


@jax.jit
def simple_dnn_forward(x, fc1_w, fc1_b, fc2_w, fc2_b):
    """x: [B, input_size] f32.  Weights in PyTorch layout:
    fc1_w [hidden, in], fc1_b [hidden], fc2_w [out, hidden], fc2_b [out].
    Returns [B, out] f32."""
    B = x.shape[0]
    # input_size == 1, so [B, 1] -> [1, B] is a pure reshape (no transpose).
    xT = x.reshape(INPUT_SIZE, B)
    b1_2d = fc1_b.reshape(HIDDEN_SIZE, 1)
    b2_2d = fc2_b.reshape(OUTPUT_SIZE, 1)

    tb = _pick_batch_tile(B)
    grid = (B // tb,)

    out_t = pl.pallas_call(
        _mlp_kernel,
        out_shape=jax.ShapeDtypeStruct((OUTPUT_SIZE, B), jnp.float32),
        grid=grid,
        in_specs=[
            # activations: tiled along the (lane) batch axis
            pl.BlockSpec((INPUT_SIZE, tb), lambda i: (0, i)),
            # weights / biases: constant block index -> VMEM-resident, no re-DMA
            pl.BlockSpec((HIDDEN_SIZE, INPUT_SIZE), lambda i: (0, 0)),
            pl.BlockSpec((HIDDEN_SIZE, 1), lambda i: (0, 0)),
            pl.BlockSpec((OUTPUT_SIZE, HIDDEN_SIZE), lambda i: (0, 0)),
            pl.BlockSpec((OUTPUT_SIZE, 1), lambda i: (0, 0)),
        ],
        out_specs=pl.BlockSpec((OUTPUT_SIZE, tb), lambda i: (0, i)),
        compiler_params=pltpu.CompilerParams(
            dimension_semantics=("parallel",),          # shards across v7x's 2 TCs
            vmem_limit_bytes=32 * 1024 * 1024,          # safe on v5e/v6e/v7x
        ),
    )(xT, fc1_w, b1_2d, fc2_w, b2_2d)

    return out_t.T  # [B, OUTPUT_SIZE], matching PyTorch semantics


def init_params(key):
    """Deterministic init in PyTorch parameter shapes (no transposes needed):
    fc1.weight [hidden, in], fc1.bias [hidden],
    fc2.weight [out, hidden], fc2.bias [out]."""
    k1, k2, k3, k4 = jax.random.split(key, 4)
    bound1 = 1.0 / (INPUT_SIZE ** 0.5)
    bound2 = 1.0 / (HIDDEN_SIZE ** 0.5)
    fc1_w = jax.random.uniform(k1, (HIDDEN_SIZE, INPUT_SIZE), jnp.float32,
                               -bound1, bound1)
    fc1_b = jax.random.uniform(k2, (HIDDEN_SIZE,), jnp.float32, -bound1, bound1)
    fc2_w = jax.random.uniform(k3, (OUTPUT_SIZE, HIDDEN_SIZE), jnp.float32,
                               -bound2, bound2)
    fc2_b = jax.random.uniform(k4, (OUTPUT_SIZE,), jnp.float32, -bound2, bound2)
    return fc1_w, fc1_b, fc2_w, fc2_b


if __name__ == "__main__":
    key = jax.random.PRNGKey(0)
    kx, kp = jax.random.split(key)

    batch = 8
    x = jax.random.normal(kx, (batch, INPUT_SIZE), jnp.float32)

    fc1_w, fc1_b, fc2_w, fc2_b = init_params(kp)

    out = simple_dnn_forward(x, fc1_w, fc1_b, fc2_w, fc2_b)
    out = jax.block_until_ready(out)

    # Pure-JAX reference (identical semantics to the PyTorch forward).
    ref = jnp.maximum(x @ fc1_w.T + fc1_b, 0.0) @ fc2_w.T + fc2_b
    assert out.shape == (batch, OUTPUT_SIZE)
    assert jnp.allclose(out, ref, atol=1e-5, rtol=1e-5)

    print("KERNEL_OK")
</pallas_src>

<mosaic_0001>
module attributes {stable_mosaic.version = 11 : i64} {
  func.func @_mlp_kernel(%arg0: i32, %arg1: memref<1x8xf32, #tpu.memory_space<vmem>>, %arg2: memref<64x1xf32, #tpu.memory_space<vmem>>, %arg3: memref<64x1xf32, #tpu.memory_space<vmem>>, %arg4: memref<2x64xf32, #tpu.memory_space<vmem>>, %arg5: memref<2x1xf32, #tpu.memory_space<vmem>>, %arg6: memref<2x8xf32, #tpu.memory_space<vmem>>) attributes {dimension_semantics = [#tpu.dimension_semantics<parallel>], iteration_bounds = array<i64: 1>, scalar_prefetch = 0 : i64, scratch_operands = 0 : i64, tpu.core_type = #tpu.core_type<tc>, window_params = [{transform_indices = @transform_0, window_bounds = array<i64: 1, 8>}, {pipeline_mode = #tpu.pipeline_mode<synchronous>, transform_indices = @transform_1, window_bounds = array<i64: 64, 1>}, {pipeline_mode = #tpu.pipeline_mode<synchronous>, transform_indices = @transform_2, window_bounds = array<i64: 64, 1>}, {pipeline_mode = #tpu.pipeline_mode<synchronous>, transform_indices = @transform_3, window_bounds = array<i64: 2, 64>}, {pipeline_mode = #tpu.pipeline_mode<synchronous>, transform_indices = @transform_4, window_bounds = array<i64: 2, 1>}, {transform_indices = @transform_5, window_bounds = array<i64: 2, 8>}]} {
    %c0 = arith.constant 0 : index
    %c0_0 = arith.constant 0 : index
    %0 = vector.load %arg2[%c0, %c0_0] : memref<64x1xf32, #tpu.memory_space<vmem>>, vector<64x1xf32>
    %c0_1 = arith.constant 0 : index
    %c0_2 = arith.constant 0 : index
    %1 = vector.load %arg1[%c0_1, %c0_2] : memref<1x8xf32, #tpu.memory_space<vmem>>, vector<1x8xf32>
    %2 = vector.broadcast %0 : vector<64x1xf32> to vector<64x8xf32>
    %3 = vector.broadcast %1 : vector<1x8xf32> to vector<64x8xf32>
    %4 = arith.mulf %2, %3 : vector<64x8xf32>
    %c0_3 = arith.constant 0 : index
    %c0_4 = arith.constant 0 : index
    %5 = vector.load %arg3[%c0_3, %c0_4] : memref<64x1xf32, #tpu.memory_space<vmem>>, vector<64x1xf32>
    %6 = vector.broadcast %5 : vector<64x1xf32> to vector<64x8xf32>
    %7 = arith.addf %4, %6 : vector<64x8xf32>
    %cst = arith.constant 0.000000e+00 : f32
    %8 = vector.broadcast %cst : f32 to vector<64x8xf32>
    %9 = arith.maximumf %7, %8 : vector<64x8xf32>
    %c0_5 = arith.constant 0 : index
    %c0_6 = arith.constant 0 : index
    %10 = vector.load %arg4[%c0_5, %c0_6] : memref<2x64xf32, #tpu.memory_space<vmem>>, vector<2x64xf32>
    %cst_7 = arith.constant dense<0.000000e+00> : vector<2x8xf32>
    %11 = tpu.matmul %10, %9, %cst_7 {dimension_numbers = #tpu.dot_dimension_numbers<[1], [0], [0], [1], [0, 0, 1, 1], [], []>} : vector<2x64xf32>, vector<64x8xf32>, vector<2x8xf32> -> vector<2x8xf32>
    %c0_8 = arith.constant 0 : index
    %c0_9 = arith.constant 0 : index
    %12 = vector.load %arg5[%c0_8, %c0_9] : memref<2x1xf32, #tpu.memory_space<vmem>>, vector<2x1xf32>
    %13 = vector.broadcast %12 : vector<2x1xf32> to vector<2x8xf32>
    %14 = arith.addf %11, %13 : vector<2x8xf32>
    %c0_10 = arith.constant 0 : index
    %c0_11 = arith.constant 0 : index
    %15 = vector.load %arg6[%c0_10, %c0_11] : memref<2x8xf32, #tpu.memory_space<vmem>>, vector<2x8xf32>
    tpu.vector_store %arg6[%c0_10, %c0_11], %14 {strides = array<i32>} : memref<2x8xf32, #tpu.memory_space<vmem>>, vector<2x8xf32>,
    return
  }
  func.func @transform_0(%arg0: i32) -> (i32, i32) {
    %c0_i32 = arith.constant 0 : i32
    %c0_i32_0 = arith.constant 0 : i32
    return %c0_i32, %arg0 : i32, i32
  }
  func.func @transform_1(%arg0: i32) -> (i32, i32) {
    %c0_i32 = arith.constant 0 : i32
    %c0_i32_0 = arith.constant 0 : i32
    %c0_i32_1 = arith.constant 0 : i32
    return %c0_i32, %c0_i32_0 : i32, i32
  }
  func.func @transform_2(%arg0: i32) -> (i32, i32) {
    %c0_i32 = arith.constant 0 : i32
    %c0_i32_0 = arith.constant 0 : i32
    %c0_i32_1 = arith.constant 0 : i32
    return %c0_i32, %c0_i32_0 : i32, i32
  }
  func.func @transform_3(%arg0: i32) -> (i32, i32) {
    %c0_i32 = arith.constant 0 : i32
    %c0_i32_0 = arith.constant 0 : i32
    %c0_i32_1 = arith.constant 0 : i32
    return %c0_i32, %c0_i32_0 : i32, i32
  }
  func.func @transform_4(%arg0: i32) -> (i32, i32) {
    %c0_i32 = arith.constant 0 : i32
    %c0_i32_0 = arith.constant 0 : i32
    %c0_i32_1 = arith.constant 0 : i32
    return %c0_i32, %c0_i32_0 : i32, i32
  }
  func.func @transform_5(%arg0: i32) -> (i32, i32) {
    %c0_i32 = arith.constant 0 : i32
    %c0_i32_0 = arith.constant 0 : i32
    return %c0_i32, %arg0 : i32, i32
  }
}

</mosaic_0001>

<llo_original>
// kernel: simple_dnn_forward.1
$region0: #{simple_dnn_forward.1}
  #allocation0 [shape = 'u32[]', space=smem, size = 0x4, offset = 0x4, fixed_abs, tag = 'smem constant byte address 0x4 - core index']
  #allocation1 [shape = 'u32[144,128]{1,0:T(1,128)}', space=vmem, size = 0x12000, scoped, tag = 'internal scratch']
  %s0 = inlined_call_operand.vmem [shape: f32[1,8], index: 0, kind: input, shape index: {}]
  %s1 = inlined_call_operand.vmem [shape: f32[64,1], index: 1, kind: input, shape index: {}]
  %s2 = inlined_call_operand.vmem [shape: f32[64,1], index: 2, kind: input, shape index: {}]
  %s3 = inlined_call_operand.vmem [shape: f32[2,64], index: 3, kind: input, shape index: {}]
  %s4 = inlined_call_operand.vmem [shape: f32[2,1], index: 4, kind: input, shape index: {}]
  %s5 = inlined_call_operand.hbm [shape: f32[2,8], index: 5, kind: output, shape index: {}]
  %s6 = sld [smem:[#allocation0]]
  $region30: #{simple_dnn_forward.1} parent=0
    _
  %s8 = ssub.s32 1, %s6
  %s9 = scalar_select 0, %s8, %s6
  $region1: #{simple_dnn_forward.1} parent=0
    #allocation2 [shape = 'u8[1024]{0}', space=vmem, size = 0x400, scoped, tag = 'output window, operand 0, single buffered']
    #allocation3 [shape = 's32[1]{0}', space=sflag, size = 0x4, scoped, tag = 'scoped memory for simple_dnn_forward.1']
    %10 = vsyncpa [#allocation3], 0
    // Predicated region
    $region2: #{simple_dnn_forward.1} parent=1 // pred_check
      _
    $region3: #{simple_dnn_forward.1} parent=1 // pred_check_branch
      %12 = sbr.rel (0) target = $region5
    $region4: #{simple_dnn_forward.1} parent=1 // pred_region
      _
    $region5: #{simple_dnn_forward.1} parent=1 // pred_fallthru
      _
    // Predicated region
    $region6: #{simple_dnn_forward.1} parent=1 // pred_check
      _
    $region7: #{simple_dnn_forward.1} parent=1 // pred_check_branch
      %14 = sbr.rel (0) target = $region9
    $region8: #{simple_dnn_forward.1} parent=1 // pred_region
      _
    $region9: #{simple_dnn_forward.1} parent=1 // pred_fallthru
      _
    // Predicated region
    $region10: #{simple_dnn_forward.1} parent=1 // pred_check
      _
    $region11: #{simple_dnn_forward.1} parent=1 // pred_check_branch
      %16 = sbr.rel (0) target = $region13
    $region12: #{simple_dnn_forward.1} parent=1 // pred_region
      _
    $region13: #{simple_dnn_forward.1} parent=1 // pred_fallthru
      _
    // Predicated region
    $region14: #{simple_dnn_forward.1} parent=1 // pred_check
      _
    $region15: #{simple_dnn_forward.1} parent=1 // pred_check_branch
      %18 = sbr.rel (0) target = $region17
    $region16: #{simple_dnn_forward.1} parent=1 // pred_region
      _
    $region17: #{simple_dnn_forward.1} parent=1 // pred_fallthru
      _
    // Predicated region
    $region18: #{simple_dnn_forward.1} parent=1 // pred_check
      _
    $region19: #{simple_dnn_forward.1} parent=1 // pred_check_branch
      %20 = sbr.rel (0) target = $region21
    $region20: #{simple_dnn_forward.1} parent=1 // pred_region
      _
    $region21: #{simple_dnn_forward.1} parent=1 // pred_fallthru
      _
    %v21 = vld [vmem:[%s1] sm:$0xff]
    %v22 = vld [vmem:[%s1 + $0x8] sm:$0xff]
    %v23 = vld [vmem:[%s1 + $0x10] sm:$0xff]
    %v24 = vld [vmem:[%s1 + $0x18] sm:$0xff]
    %v25 = vld [vmem:[%s1 + $0x20] sm:$0xff]
    %v26 = vld [vmem:[%s1 + $0x28] sm:$0xff]
    %v27 = vld [vmem:[%s1 + $0x30] sm:$0xff]
    %v28 = vld [vmem:[%s1 + $0x38] sm:$0xff]
    %v29 = vld [vmem:[%s0] sm:$0x1]
    %31 = vset.pattern.permute.xlu0 0
    %32 = vperm.xlu0 %31, %v21
    %v33 = vpop.permute.xlu0 %32
    %36 = vset.pattern.permute.xlu0 0
    %37 = vperm.xlu0 %36, %v22
    %v38 = vpop.permute.xlu0 %37
    %41 = vset.pattern.permute.xlu0 0
    %42 = vperm.xlu0 %41, %v23
    %v43 = vpop.permute.xlu0 %42
    %46 = vset.pattern.permute.xlu0 0
    %47 = vperm.xlu0 %46, %v24
    %v48 = vpop.permute.xlu0 %47
    %51 = vset.pattern.permute.xlu0 0
    %52 = vperm.xlu0 %51, %v25
    %v53 = vpop.permute.xlu0 %52
    %56 = vset.pattern.permute.xlu0 0
    %57 = vperm.xlu0 %56, %v26
    %v58 = vpop.permute.xlu0 %57
    %61 = vset.pattern.permute.xlu0 0
    %62 = vperm.xlu0 %61, %v27
    %v63 = vpop.permute.xlu0 %62
    %66 = vset.pattern.permute.xlu0 0
    %67 = vperm.xlu0 %66, %v28
    %v68 = vpop.permute.xlu0 %67
    %v71 = vlaneseq
    %v72 = vshrl.u32 %v71, 7
    %v73 = vsub.s32 0, %v72
    %v74 = vrot.slane %v29, %v73
    %v76 = vmul.f32 %v33, %v74
    %v77 = vmul.f32 %v38, %v74
    %v78 = vmul.f32 %v43, %v74
    %v79 = vmul.f32 %v48, %v74
    %v80 = vmul.f32 %v53, %v74
    %v81 = vmul.f32 %v58, %v74
    %v82 = vmul.f32 %v63, %v74
    %v83 = vmul.f32 %v68, %v74
    %v84 = vld [vmem:[%s2] sm:$0xff]
    %v85 = vld [vmem:[%s2 + $0x8] sm:$0xff]
    %v86 = vld [vmem:[%s2 + $0x10] sm:$0xff]
    %v87 = vld [vmem:[%s2 + $0x18] sm:$0xff]
    %v88 = vld [vmem:[%s2 + $0x20] sm:$0xff]
    %v89 = vld [vmem:[%s2 + $0x28] sm:$0xff]
    %v90 = vld [vmem:[%s2 + $0x30] sm:$0xff]
    %v91 = vld [vmem:[%s2 + $0x38] sm:$0xff]
    %93 = vset.pattern.permute.xlu0 0
    %94 = vperm.xlu0 %93, %v84
    %v95 = vpop.permute.xlu0 %94
    %98 = vset.pattern.permute.xlu0 0
    %99 = vperm.xlu0 %98, %v85
    %v100 = vpop.permute.xlu0 %99
    %103 = vset.pattern.permute.xlu0 0
    %104 = vperm.xlu0 %103, %v86
    %v105 = vpop.permute.xlu0 %104
    %108 = vset.pattern.permute.xlu0 0
    %109 = vperm.xlu0 %108, %v87
    %v110 = vpop.permute.xlu0 %109
    %113 = vset.pattern.permute.xlu0 0
    %114 = vperm.xlu0 %113, %v88
    %v115 = vpop.permute.xlu0 %114
    %118 = vset.pattern.permute.xlu0 0
    %119 = vperm.xlu0 %118, %v89
    %v120 = vpop.permute.xlu0 %119
    %123 = vset.pattern.permute.xlu0 0
    %124 = vperm.xlu0 %123, %v90
    %v125 = vpop.permute.xlu0 %124
    %128 = vset.pattern.permute.xlu0 0
    %129 = vperm.xlu0 %128, %v91
    %v130 = vpop.permute.xlu0 %129
    %v132 = vadd.f32 %v76, %v95
    %v133 = vadd.f32 %v77, %v100
    %v134 = vadd.f32 %v78, %v105
    %v135 = vadd.f32 %v79, %v110
    %v136 = vadd.f32 %v80, %v115
    %v137 = vadd.f32 %v81, %v120
    %v138 = vadd.f32 %v82, %v125
    %v139 = vadd.f32 %v83, %v130
    %v140 = vmax.f32 %v132, 0.0
    %v141 = vmax.f32 %v133, 0.0
    %v142 = vmax.f32 %v134, 0.0
    %v143 = vmax.f32 %v135, 0.0
    %v144 = vmax.f32 %v136, 0.0
    %v145 = vmax.f32 %v137, 0.0
    %v146 = vmax.f32 %v138, 0.0
    %v147 = vmax.f32 %v139, 0.0
    %v148 = vld [vmem:[%s3] sm:$0x3]
    %v149 = vld [vmem:[%s4] sm:$0x3]
    %151 = vset.pattern.permute.xlu0 0
    %152 = vperm.xlu0 %151, %v149
    %v153 = vpop.permute.xlu0 %152
    %vm155 = vcmask 523264
    %v157 = vsel %vm155, %v148, 0
    %159 = vmatprep.subr.mxu0 0.0
    %160 = vmatpush1.msra.mxu0 %v140
    %161 = vmatprep.subr.mxu0 0.0
    %162 = vmatpush1.msra.mxu0 %v141
    %163 = vmatprep.subr.mxu0 0.0
    %164 = vmatpush1.msra.mxu0 %v142
    %165 = vmatprep.subr.mxu0 0.0
    %166 = vmatpush1.msra.mxu0 %v143
    %167 = vmatprep.subr.mxu0 0.0
    %168 = vmatpush1.msra.mxu0 %v144
    %169 = vmatprep.subr.mxu0 0.0
    %170 = vmatpush1.msra.mxu0 %v145
    %171 = vmatprep.subr.mxu0 0.0
    %172 = vmatpush1.msra.mxu0 %v146
    %173 = vmatprep.subr.mxu0 0.0
    %174 = vmatpush1.msra.mxu0 %v147
    %175 = vmatprep.subr.mxu0 0.0
    %176 = vmatpush1.msra.mxu0 0.0
    %177 = vmatprep.subr.mxu0 0.0
    %178 = vmatpush1.msra.mxu0 0.0
    %179 = vmatprep.subr.mxu0 0.0
    %180 = vmatpush1.msra.mxu0 0.0
    %181 = vmatprep.subr.mxu0 0.0
    %182 = vmatpush1.msra.mxu0 0.0
    %183 = vmatprep.subr.mxu0 0.0
    %184 = vmatpush1.msra.mxu0 0.0
    %185 = vmatprep.subr.mxu0 0.0
    %186 = vmatpush1.msra.mxu0 0.0
    %187 = vmatprep.subr.mxu0 0.0
    %188 = vmatpush1.msra.mxu0 0.0
    %189 = vmatprep.subr.mxu0 0.0
    %190 = vmatpush1.msra.mxu0 0.0
    %191 = vmatprep.subr.mxu0 0.0
    %192 = vmatpush1.msra.mxu0 0.0
    %193 = vmatprep.subr.mxu0 0.0
    %194 = vmatpush1.msra.mxu0 0.0
    %195 = vmatprep.subr.mxu0 0.0
    %196 = vmatpush1.msra.mxu0 0.0
    %197 = vmatprep.subr.mxu0 0.0
    %198 = vmatpush1.msra.mxu0 0.0
    %199 = vmatprep.subr.mxu0 0.0
    %200 = vmatpush1.msra.mxu0 0.0
    %201 = vmatprep.subr.mxu0 0.0
    %202 = vmatpush1.msra.mxu0 0.0
    %203 = vmatprep.subr.mxu0 0.0
    %204 = vmatpush1.msra.mxu0 0.0
    %205 = vmatprep.subr.mxu0 0.0
    %206 = vmatpush1.msra.mxu0 0.0
    %207 = vmatprep.subr.mxu0 0.0
    %208 = vmatpush1.msra.mxu0 0.0
    %209 = vmatprep.subr.mxu0 0.0
    %210 = vmatpush1.msra.mxu0 0.0
    %211 = vmatprep.subr.mxu0 0.0
    %212 = vmatpush1.msra.mxu0 0.0
    %213 = vmatprep.subr.mxu0 0.0
    %214 = vmatpush1.msra.mxu0 0.0
    %215 = vmatprep.subr.mxu0 0.0
    %216 = vmatpush1.msra.mxu0 0.0
    %217 = vmatprep.subr.mxu0 0.0
    %218 = vmatpush1.msra.mxu0 0.0
    %219 = vmatprep.subr.mxu0 0.0
    %220 = vmatpush1.msra.mxu0 0.0
    %221 = vmatprep.subr.mxu0 0.0
    %222 = vmatpush1.msra.mxu0 0.0
    %223 = vmatprep.mubr.f32.mxu0 0.0
    %224 = vmatmul.mubr.f32.gmra.mrb[0].mxu0 %v157
    %v225 = vpop.f32.mrb[0].mxu0
    %v226 = vadd.f32 %v153, %v225
    %v227 = vpop.f32.mrb[0].mxu0
    %228 = vdwg.mxu0
    %vm229 = vcmask 58368
    %230 = vst.msk [vmem:[#allocation2] sm:$0x3] %vm229, %v226
    // Predicated region
    $region22: #{simple_dnn_forward.1} parent=1 // pred_check
      _
    $region23: #{simple_dnn_forward.1} parent=1 // pred_check_branch
      %232 = sbr.rel (0) target = $region25
    $region24: #{simple_dnn_forward.1} parent=1 // pred_region
      %s234 = ssub.s32 32, 32
      %235 = vsyncadd [#allocation3], %s234
      %s237 = sshll.u32 [#allocation2], 4
      %s238 = int_to_ptr.vmem [resolvable:$true] %s237
      %240 = dma.vmem_to_hbm [thread:$0]  %s238, 32, %s5, [#allocation3]
    $region25: #{simple_dnn_forward.1} parent=1 // pred_fallthru
      _
    // Predicated region
    $region26: #{simple_dnn_forward.1} parent=1 // pred_check
      _
    $region27: #{simple_dnn_forward.1} parent=1 // pred_check_branch
      %242 = sbr.rel (0) target = $region29
    $region28: #{simple_dnn_forward.1} parent=1 // pred_region
      %243 = dma.done [#allocation3], 32
    $region29: #{simple_dnn_forward.1} parent=1 // pred_fallthru
      _
    %244 = vsyncpa [#allocation3], 1

</llo_original>
